<compile_context>
chip_gen: v7x
topology: tpu7x:2x2x1
jax: 0.10.0
libtpu: 0.0.40
codegen_flags: <defaults>
</compile_context>

<pallas_src>
import functools
import math

import jax
import jax.numpy as jnp
from jax import lax
from jax.experimental import pallas as pl
from jax.experimental.pallas import tpu as pltpu


def _round_up(n, m):
    return ((n + m - 1) // m) * m


def _choose_batch_tile(B, S):
    """Batch elements per grid step.

    Target >=128 rows (M dim) per step to fill MXU sublanes, but keep at least
    two grid steps when B allows so both v7x TensorCores get work.
    """
    rows_target = 128
    bt = max(1, min(B, (rows_target + S - 1) // S))
    if B >= 2 and (B + bt - 1) // bt < 2:
        bt = (B + 1) // 2
    return bt


def _attention_head_kernel(x_ref, wqkv_ref, out_ref, attnw_ref, *, h_pad, scale):
    """One grid step == `bt` batch elements.

    x_ref:     (bt, S, D)        VMEM tile
    wqkv_ref:  (D, 3*h_pad)      fused, zero-padded QKV weight (same block every step)
    out_ref:   (bt, S, h_pad)    lane-dense attention output (padded cols are zero)
    attnw_ref: (bt, S, S)        attention weights
    """
    bt, s, d = x_ref.shape
    w = wqkv_ref[...]                                   # (D, 3*h_pad)

    # Fused Q/K/V projection: single MXU matmul with f32 accumulation.
    # Merge (bt, S) into the M dim; S is a multiple of 8 here so this is a
    # layout-preserving reshape.
    x2 = x_ref[...].reshape(bt * s, d)                  # (bt*S, D)
    qkv = jnp.dot(x2, w, preferred_element_type=jnp.float32)   # (bt*S, 3*h_pad)
    qkv = qkv.reshape(bt, s, 3 * h_pad)

    # Lane-tile-aligned slices (h_pad is a multiple of 128).
    q = qkv[:, :, :h_pad] * scale                       # scale folded into q
    k = qkv[:, :, h_pad:2 * h_pad]
    v = qkv[:, :, 2 * h_pad:]

    # scores = q @ k^T without materializing k^T: contract on the last dims,
    # batch over the leading dim.
    scores = lax.dot_general(
        q, k, (((2,), (2,)), ((0,), (0,))),
        preferred_element_type=jnp.float32)             # (bt, S, S)

    # Numerically-stable softmax over the key axis (kept in f32; v5e has no
    # bf16 VPU/EUP).
    m = jnp.max(scores, axis=-1, keepdims=True)
    e = jnp.exp(scores - m)
    denom = jnp.sum(e, axis=-1, keepdims=True)
    weights = e * pl.reciprocal(denom, approx=True)     # EUP reciprocal

    # Dropout is identity in eval mode.
    out = lax.dot_general(
        weights, v, (((2,), (1,)), ((0,), (0,))),
        preferred_element_type=jnp.float32)             # (bt, S, h_pad)

    out_ref[...] = out.astype(out_ref.dtype)
    attnw_ref[...] = weights.astype(attnw_ref.dtype)


def single_attention_head(x, wq, wk, wv):
    """Pallas-backed forward pass.

    Args:
      x:  (B, S, D)
      wq, wk, wv: (D, H) projection weights (bias=False)
    Returns:
      (attention_output (B, S, H), attention_weights (B, S, S))
    """
    B, S, D = x.shape
    H = wq.shape[-1]
    scale = 1.0 / math.sqrt(H)

    H_pad = _round_up(H, 128)            # lane-dense projections / output store
    bt = _choose_batch_tile(B, S)
    B_pad = _round_up(B, bt)

    # Fused QKV weight; each segment zero-padded to H_pad columns. Zero padding
    # is exact: padded q/k columns contribute 0 to the QK^T contraction and
    # padded v columns produce zero output columns that are sliced off below.
    def _pad_w(w):
        return jnp.pad(w, ((0, 0), (0, H_pad - H)))

    w_qkv = jnp.concatenate([_pad_w(wq), _pad_w(wk), _pad_w(wv)], axis=-1)  # (D, 3*H_pad)

    x_p = x if B_pad == B else jnp.pad(x, ((0, B_pad - B), (0, 0), (0, 0)))

    itemsize = x.dtype.itemsize
    flops = (2 * B_pad * S * D * 3 * H_pad            # fused projection
             + 2 * B_pad * S * S * H_pad              # QK^T
             + 2 * B_pad * S * S * H_pad)             # PV
    bytes_accessed = (B_pad * S * D * itemsize
                      + D * 3 * H_pad * w_qkv.dtype.itemsize
                      + B_pad * S * H_pad * itemsize
                      + B_pad * S * S * itemsize)
    cost = pl.CostEstimate(flops=flops,
                           transcendentals=B_pad * S * S,
                           bytes_accessed=bytes_accessed)

    kernel = functools.partial(_attention_head_kernel, h_pad=H_pad, scale=scale)

    grid_spec = pltpu.PrefetchScalarGridSpec(
        num_scalar_prefetch=0,
        grid=(B_pad // bt,),
        in_specs=[
            pl.BlockSpec((bt, S, D), lambda i: (i, 0, 0)),
            pl.BlockSpec((D, 3 * H_pad), lambda i: (0, 0)),
        ],
        out_specs=[
            pl.BlockSpec((bt, S, H_pad), lambda i: (i, 0, 0)),
            pl.BlockSpec((bt, S, S), lambda i: (i, 0, 0)),
        ],
    )

    out_p, attnw_p = pl.pallas_call(
        kernel,
        out_shape=(
            jax.ShapeDtypeStruct((B_pad, S, H_pad), x.dtype),
            jax.ShapeDtypeStruct((B_pad, S, S), x.dtype),
        ),
        grid_spec=grid_spec,
        compiler_params=pltpu.CompilerParams(
            dimension_semantics=("parallel",)
        ),
        cost_estimate=cost,
    )(x_p, w_qkv)

    # Strip batch / head-dim padding.
    return out_p[:B, :, :H], attnw_p[:B]


def _reference(x, wq, wk, wv):
    """Pure-JAX reference for correctness checking."""
    q = x @ wq
    k = x @ wk
    v = x @ wv
    scores = jnp.einsum("bsh,bth->bst", q, k) / math.sqrt(wq.shape[-1])
    weights = jax.nn.softmax(scores, axis=-1)
    out = jnp.einsum("bst,bth->bsh", weights, v)
    return out, weights


if __name__ == "__main__":
    # Small shapes consistent with the module: batch=2, seq=8, dim=32, head=16.
    B, S, D, H = 2, 8, 32, 16

    key = jax.random.PRNGKey(0)
    kx, kq, kk, kv = jax.random.split(key, 4)

    x = jax.random.normal(kx, (B, S, D), dtype=jnp.float32)
    # Deterministic "kaiming-uniform-like" init for bias-free Linear layers.
    bound = 1.0 / math.sqrt(D)
    wq = jax.random.uniform(kq, (D, H), minval=-bound, maxval=bound, dtype=jnp.float32)
    wk = jax.random.uniform(kk, (D, H), minval=-bound, maxval=bound, dtype=jnp.float32)
    wv = jax.random.uniform(kv, (D, H), minval=-bound, maxval=bound, dtype=jnp.float32)

    out, attn_w = single_attention_head(x, wq, wk, wv)
    out = jax.block_until_ready(out)
    attn_w = jax.block_until_ready(attn_w)

    # Verify against pure-JAX reference. Tolerance loosened because the softmax
    # denominator uses the EUP approximate reciprocal (~1e-3 relative).
    ref_out, ref_w = _reference(x, wq, wk, wv)
    assert out.shape == (B, S, H)
    assert attn_w.shape == (B, S, S)
    assert jnp.allclose(out, ref_out, atol=1e-2, rtol=1e-2)
    assert jnp.allclose(attn_w, ref_w, atol=1e-2, rtol=1e-2)

    print("KERNEL_OK")
</pallas_src>

<mosaic_0001>
module attributes {stable_mosaic.version = 11 : i64} {
  func.func @_attention_head_kernel(%arg0: i32, %arg1: memref<1x8x32xf32, #tpu.memory_space<vmem>>, %arg2: memref<32x384xf32, #tpu.memory_space<vmem>>, %arg3: memref<1x8x128xf32, #tpu.memory_space<vmem>>, %arg4: memref<1x8x8xf32, #tpu.memory_space<vmem>>) attributes {dimension_semantics = [#tpu.dimension_semantics<parallel>], iteration_bounds = array<i64: 2>, scalar_prefetch = 0 : i64, scratch_operands = 0 : i64, tpu.core_type = #tpu.core_type<tc>, window_params = [{transform_indices = @transform_0, window_bounds = array<i64: 1, 8, 32>}, {pipeline_mode = #tpu.pipeline_mode<synchronous>, transform_indices = @transform_1, window_bounds = array<i64: 32, 384>}, {transform_indices = @transform_2, window_bounds = array<i64: 1, 8, 128>}, {transform_indices = @transform_3, window_bounds = array<i64: 1, 8, 8>}]} {
    %c0 = arith.constant 0 : index
    %c0_0 = arith.constant 0 : index
    %0 = vector.load %arg2[%c0, %c0_0] : memref<32x384xf32, #tpu.memory_space<vmem>>, vector<32x384xf32>
    %c0_1 = arith.constant 0 : index
    %c0_2 = arith.constant 0 : index
    %c0_3 = arith.constant 0 : index
    %1 = vector.load %arg1[%c0_1, %c0_2, %c0_3] : memref<1x8x32xf32, #tpu.memory_space<vmem>>, vector<1x8x32xf32>
    %2 = vector.shape_cast %1 : vector<1x8x32xf32> to vector<8x32xf32>
    %cst = arith.constant dense<0.000000e+00> : vector<8x384xf32>
    %3 = tpu.matmul %2, %0, %cst {dimension_numbers = #tpu.dot_dimension_numbers<[1], [0], [0], [1], [0, 0, 1, 1], [], []>} : vector<8x32xf32>, vector<32x384xf32>, vector<8x384xf32> -> vector<8x384xf32>
    %4 = vector.shape_cast %3 : vector<8x384xf32> to vector<1x8x384xf32>
    %5 = vector.extract_strided_slice %4 {offsets = [0, 0, 0], sizes = [1, 8, 128], strides = [1, 1, 1]} : vector<1x8x384xf32> to vector<1x8x128xf32>
    %cst_4 = arith.constant 2.500000e-01 : f32
    %6 = vector.broadcast %cst_4 : f32 to vector<1x8x128xf32>
    %7 = arith.mulf %5, %6 : vector<1x8x128xf32>
    %8 = vector.extract_strided_slice %4 {offsets = [0, 0, 128], sizes = [1, 8, 128], strides = [1, 1, 1]} : vector<1x8x384xf32> to vector<1x8x128xf32>
    %9 = vector.extract_strided_slice %4 {offsets = [0, 0, 256], sizes = [1, 8, 128], strides = [1, 1, 1]} : vector<1x8x384xf32> to vector<1x8x128xf32>
    %cst_5 = arith.constant dense<0.000000e+00> : vector<1x8x8xf32>
    %10 = tpu.matmul %7, %8, %cst_5 {dimension_numbers = #tpu.dot_dimension_numbers<[2], [2], [1], [1], [0, 0, 0, 1, 1, 1], [0], [0]>} : vector<1x8x128xf32>, vector<1x8x128xf32>, vector<1x8x8xf32> -> vector<1x8x8xf32>
    %cst_6 = arith.constant dense<0xFF800000> : vector<1x8xf32>
    %11 = vector.multi_reduction <maximumf>, %10, %cst_6 [2] : vector<1x8x8xf32> to vector<1x8xf32>
    %12 = vector.shape_cast %11 : vector<1x8xf32> to vector<1x8x1xf32>
    %13 = vector.broadcast %12 : vector<1x8x1xf32> to vector<1x8x8xf32>
    %14 = arith.subf %10, %13 : vector<1x8x8xf32>
    %15 = math.exp %14 : vector<1x8x8xf32>
    %cst_7 = arith.constant dense<0.000000e+00> : vector<1x8xf32>
    %16 = vector.multi_reduction <add>, %15, %cst_7 [2] : vector<1x8x8xf32> to vector<1x8xf32>
    %17 = vector.shape_cast %16 : vector<1x8xf32> to vector<1x8x1xf32>
    %18 = tpu.reciprocal %17 {approx = true} : vector<1x8x1xf32> -> vector<1x8x1xf32>
    %19 = vector.broadcast %18 : vector<1x8x1xf32> to vector<1x8x8xf32>
    %20 = arith.mulf %15, %19 : vector<1x8x8xf32>
    %cst_8 = arith.constant dense<0.000000e+00> : vector<1x8x128xf32>
    %21 = tpu.matmul %20, %9, %cst_8 {dimension_numbers = #tpu.dot_dimension_numbers<[2], [1], [1], [2], [0, 0, 0, 1, 1, 2], [0], [0]>} : vector<1x8x8xf32>, vector<1x8x128xf32>, vector<1x8x128xf32> -> vector<1x8x128xf32>
    %c0_9 = arith.constant 0 : index
    %c0_10 = arith.constant 0 : index
    %c0_11 = arith.constant 0 : index
    %22 = vector.load %arg3[%c0_9, %c0_10, %c0_11] : memref<1x8x128xf32, #tpu.memory_space<vmem>>, vector<1x8x128xf32>
    tpu.vector_store %arg3[%c0_9, %c0_10, %c0_11], %21 {strides = array<i32>} : memref<1x8x128xf32, #tpu.memory_space<vmem>>, vector<1x8x128xf32>,
    %c0_12 = arith.constant 0 : index
    %c0_13 = arith.constant 0 : index
    %c0_14 = arith.constant 0 : index
    %23 = vector.load %arg4[%c0_12, %c0_13, %c0_14] : memref<1x8x8xf32, #tpu.memory_space<vmem>>, vector<1x8x8xf32>
    tpu.vector_store %arg4[%c0_12, %c0_13, %c0_14], %20 {strides = array<i32>} : memref<1x8x8xf32, #tpu.memory_space<vmem>>, vector<1x8x8xf32>,
    return
  }
  func.func @transform_0(%arg0: i32) -> (i32, i32, i32) {
    %c0_i32 = arith.constant 0 : i32
    %c0_i32_0 = arith.constant 0 : i32
    %c0_i32_1 = arith.constant 0 : i32
    return %arg0, %c0_i32, %c0_i32_0 : i32, i32, i32
  }
  func.func @transform_1(%arg0: i32) -> (i32, i32) {
    %c0_i32 = arith.constant 0 : i32
    %c0_i32_0 = arith.constant 0 : i32
    %c0_i32_1 = arith.constant 0 : i32
    return %c0_i32, %c0_i32_0 : i32, i32
  }
  func.func @transform_2(%arg0: i32) -> (i32, i32, i32) {
    %c0_i32 = arith.constant 0 : i32
    %c0_i32_0 = arith.constant 0 : i32
    %c0_i32_1 = arith.constant 0 : i32
    return %arg0, %c0_i32, %c0_i32_0 : i32, i32, i32
  }
  func.func @transform_3(%arg0: i32) -> (i32, i32, i32) {
    %c0_i32 = arith.constant 0 : i32
    %c0_i32_0 = arith.constant 0 : i32
    %c0_i32_1 = arith.constant 0 : i32
    return %arg0, %c0_i32, %c0_i32_0 : i32, i32, i32
  }
}

</mosaic_0001>

<llo_original>
// kernel: tpu_custom_call.1
$region0: #{tpu_custom_call.1}
  #allocation0 [shape = 'u32[]', space=smem, size = 0x4, offset = 0x4, fixed_abs, tag = 'smem constant byte address 0x4 - core index']
  #allocation1 [shape = 'u32[144,128]{1,0:T(1,128)}', space=vmem, size = 0x12000, scoped, tag = 'internal scratch']
  %s0 = inlined_call_operand.hbm [shape: f32[2,8,32], index: 0, kind: input, shape index: {}]
  %s1 = inlined_call_operand.hbm [shape: f32[32,384], index: 1, kind: input, shape index: {}]
  %s2 = inlined_call_operand.hbm [shape: f32[2,8,128], index: 2, kind: output, shape index: {0}]
  %s3 = inlined_call_operand.hbm [shape: f32[2,8,8], index: 3, kind: output, shape index: {1}]
  %4 = xla_tuple %s2, %s3
  %s5 = sld [smem:[#allocation0]]
  $region57: #{tpu_custom_call.1} parent=0
    _
  %s7 = ssub.s32 1, %s5
  %s8 = scalar_select 0, %s7, %s5
  $region1: #{tpu_custom_call.1} parent=0
    #allocation2 [shape = 'u8[8192]{0}', space=vmem, size = 0x2000, scoped, tag = 'input window, operand 0']
    #allocation3 [shape = 's32[2]{0}', space=sflag, size = 0x8, scoped, tag = 'scoped memory for tpu_custom_call.1']
    #allocation4 [shape = 's32[2]{0}', space=sflag, size = 0x8, scoped, tag = 'scoped memory for tpu_custom_call.1']
    #allocation5 [shape = 'u8[49152]{0}', space=vmem, size = 0xc000, scoped, tag = 'input window, operand 1, single buffered']
    #allocation6 [shape = 's32[1]{0}', space=sflag, size = 0x4, scoped, tag = 'scoped memory for tpu_custom_call.1']
    #allocation7 [shape = 'u8[8192]{0}', space=vmem, size = 0x2000, scoped, tag = 'output window, operand 0']
    #allocation8 [shape = 'u8[8192]{0}', space=vmem, size = 0x2000, scoped, tag = 'output window, operand 1']
    #allocation9 [shape = 's32[2]{0}', space=sflag, size = 0x8, scoped, tag = 'scoped memory for tpu_custom_call.1']
    %9 = vsyncpa [#allocation3], 0
    %s10 = scalar_lea.sflag [#allocation3], 1
    %11 = vsyncpa %s10, 0
    %12 = vsyncpa [#allocation6], 0
    %13 = vsyncpa [#allocation4], 0
    %s14 = scalar_lea.sflag [#allocation4], 1
    %15 = vsyncpa %s14, 0
    %16 = vsyncpa [#allocation9], 0
    %s17 = scalar_lea.sflag [#allocation9], 1
    %18 = vsyncpa %s17, 0
    loop: start=0, step=1, limit=4
    $region2: #{tpu_custom_call.1} parent=1 // loop_pre_header
      _
    $region3: #{tpu_custom_call.1} parent=1 // loop_header
      %s20 = sphi 0, %s24
      %p21 = scmp.ge.s32.totalorder %s20, 4
      %s30 = sphi 0, %s32
      %s33 = sphi 0, %s30
      %s34 = sphi 0, %s33
      %s50 = sphi 0, %s34
      %s54 = sphi 0, %s54
      %s56 = sphi 0, %s54
      %s57 = sphi 0, %s56
      %s71 = sphi 0, %s57
      %s77 = sphi 0, %s79
      %s80 = sphi 0, %s77
      %s81 = sphi 0, %s80
      %s97 = sphi 0, %s81
      %s103 = sphi 0, %s105
      %s106 = sphi 0, %s103
      %s107 = sphi 0, %s106
      %s123 = sphi 0, %s107
    $region4: #{tpu_custom_call.1} parent=1 // loop_header_branch
      %23 = sbr.rel (%p21) target = $region8
    $region5: #{tpu_custom_call.1} parent=1 // loop_body
      %s25 = ssub.s32 %s20, 1
      %s26 = ssub.s32 %s20, 2
      %s27 = sadd.s32 %s20, 1
      %s28 = ssub.s32 %s20, %s27
      %p29 = scmp.eq.s32.totalorder %s28, 0
      %s31 = sadd.s32 %s30, 1
      %s32 = scalar_select %p29, %s30, %s31
      %p35 = pneg %p29
      %p36 = scmp.eq.s32.totalorder %s20, 1
      %p37 = por %p35, %p36
      %p38 = scmp.ne.s32.totalorder %s30, %s33
      %p39 = scmp.eq.s32.totalorder %s20, 0
      %p40 = por %p38, %p39
      %p41 = scmp.ne.s32.totalorder %s30, %s33
      %p42 = scmp.eq.s32.totalorder %s25, 1
      %p43 = por %p41, %p42
      %p44 = scmp.ne.s32.totalorder %s33, %s34
      %p45 = scmp.eq.s32.totalorder %s25, 0
      %p46 = por %p44, %p45
      %p47 = scmp.ne.s32.totalorder %s33, %s34
      %p48 = scmp.eq.s32.totalorder %s26, 1
      %p49 = por %p47, %p48
      %p51 = scmp.ne.s32.totalorder %s34, %s50
      %p52 = scmp.eq.s32.totalorder %s26, 0
      %p53 = por %p51, %p52
      %s55 = sadd.s32 %s54, 1
      %p58 = scmp.eq.s32.totalorder %s20, 1
      %p59 = scmp.ne.s32.totalorder %s54, %s56
      %p60 = scmp.eq.s32.totalorder %s20, 0
      %p61 = por %p59, %p60
      %p62 = scmp.ne.s32.totalorder %s54, %s56
      %p63 = scmp.eq.s32.totalorder %s25, 1
      %p64 = por %p62, %p63
      %p65 = scmp.ne.s32.totalorder %s56, %s57
      %p66 = scmp.eq.s32.totalorder %s25, 0
      %p67 = por %p65, %p66
      %p68 = scmp.ne.s32.totalorder %s56, %s57
      %p69 = scmp.eq.s32.totalorder %s26, 1
      %p70 = por %p68, %p69
      %p72 = scmp.ne.s32.totalorder %s57, %s71
      %p73 = scmp.eq.s32.totalorder %s26, 0
      %p74 = por %p72, %p73
      %s75 = ssub.s32 %s20, %s27
      %p76 = scmp.eq.s32.totalorder %s75, 0
      %s78 = sadd.s32 %s77, 1
      %s79 = scalar_select %p76, %s77, %s78
      %p82 = pneg %p76
      %p83 = scmp.eq.s32.totalorder %s20, 1
      %p84 = por %p82, %p83
      %p85 = scmp.ne.s32.totalorder %s77, %s80
      %p86 = scmp.eq.s32.totalorder %s20, 0
      %p87 = por %p85, %p86
      %p88 = scmp.ne.s32.totalorder %s77, %s80
      %p89 = scmp.eq.s32.totalorder %s25, 1
      %p90 = por %p88, %p89
      %p91 = scmp.ne.s32.totalorder %s80, %s81
      %p92 = scmp.eq.s32.totalorder %s25, 0
      %p93 = por %p91, %p92
      %p94 = scmp.ne.s32.totalorder %s80, %s81
      %p95 = scmp.eq.s32.totalorder %s26, 1
      %p96 = por %p94, %p95
      %p98 = scmp.ne.s32.totalorder %s81, %s97
      %p99 = scmp.eq.s32.totalorder %s26, 0
      %p100 = por %p98, %p99
      %s101 = ssub.s32 %s20, %s27
      %p102 = scmp.eq.s32.totalorder %s101, 0
      %s104 = sadd.s32 %s103, 1
      %s105 = scalar_select %p102, %s103, %s104
      %p108 = pneg %p102
      %p109 = scmp.eq.s32.totalorder %s20, 1
      %p110 = por %p108, %p109
      %p111 = scmp.ne.s32.totalorder %s103, %s106
      %p112 = scmp.eq.s32.totalorder %s20, 0
      %p113 = por %p111, %p112
      %p114 = scmp.ne.s32.totalorder %s103, %s106
      %p115 = scmp.eq.s32.totalorder %s25, 1
      %p116 = por %p114, %p115
      %p117 = scmp.ne.s32.totalorder %s106, %s107
      %p118 = scmp.eq.s32.totalorder %s25, 0
      %p119 = por %p117, %p118
      %p120 = scmp.ne.s32.totalorder %s106, %s107
      %p121 = scmp.eq.s32.totalorder %s26, 1
      %p122 = por %p120, %p121
      %p124 = scmp.ne.s32.totalorder %s107, %s123
      %p125 = scmp.eq.s32.totalorder %s26, 0
      %p126 = por %p124, %p125
      %p127 = scmp.le.s32.totalorder 1, %s20
      %p128 = scmp.lt.s32.totalorder %s20, 3
      %p129 = pnand %p127, %p128
      %p130 = pneg %p129
      // Predicated region
      $region9: #{tpu_custom_call.1} parent=5 // pred_check
        _
      $region10: #{tpu_custom_call.1} parent=5 // pred_check_branch
        %132 = sbr.rel (%p129) target = $region12
      $region11: #{tpu_custom_call.1} parent=5 // pred_region
        %s133 = ssub.s32 %s20, 1
        // Predicated region
        $region13: #{tpu_custom_call.1} parent=11 // pred_check
          %p134 = pneg %p67
        $region14: #{tpu_custom_call.1} parent=11 // pred_check_branch
          %136 = sbr.rel (%p134) target = $region16
        $region15: #{tpu_custom_call.1} parent=11 // pred_region
          %s138 = ssub.s32 1536, 1536
          %139 = vsyncadd [#allocation6], %s138
          %s140 = sshll.u32 [#allocation5], 4
          %s141 = int_to_ptr.vmem [resolvable:$true] %s140
          %146 = dma.hbm_to_vmem [thread:$0]  %s1, 1536, %s141, [#allocation6], 384, 384, 24
        $region16: #{tpu_custom_call.1} parent=11 // pred_fallthru
          _
      $region12: #{tpu_custom_call.1} parent=5 // pred_fallthru
        _
      %p147 = scmp.lt.s32.totalorder %s20, 2
      // Predicated region
      $region17: #{tpu_custom_call.1} parent=5 // pred_check
        %p148 = pneg %p147
      $region18: #{tpu_custom_call.1} parent=5 // pred_check_branch
        %150 = sbr.rel (%p148) target = $region20
      $region19: #{tpu_custom_call.1} parent=5 // pred_region
        // Predicated region
        $region21: #{tpu_custom_call.1} parent=19 // pred_check
          %p151 = pneg %p40
        $region22: #{tpu_custom_call.1} parent=19 // pred_check_branch
          %153 = sbr.rel (%p151) target = $region24
        $region23: #{tpu_custom_call.1} parent=19 // pred_region
          %s154 = sand.u32 %s30, 1
          %s155 = scalar_lea.sflag [#allocation3], %s154
          %s156 = sand.u32 %s30, 1
          %s157 = smul.addr %s156, 8
          %s158 = scalar_lea.vmem [#allocation2], %s157
          %s160 = ssub.s32 128, 128
          %161 = vsyncadd %s155, %s160
          %s162 = smul.addr %s20, 128
          %s163 = scalar_lea.hbm %s0, %s162
          %s165 = sshll.u32 %s158, 4
          %s166 = int_to_ptr.vmem [resolvable:$true] %s165
          %168 = dma.hbm_to_vmem [thread:$0]  %s163, 128, %s166, %s155
        $region24: #{tpu_custom_call.1} parent=19 // pred_fallthru
          _
      $region20: #{tpu_custom_call.1} parent=5 // pred_fallthru
        _
      %p169 = scmp.le.s32.totalorder 1, %s20
      %p170 = scmp.lt.s32.totalorder %s20, 3
      %p171 = pnand %p169, %p170
      %p172 = pneg %p171
      // Predicated region
      $region25: #{tpu_custom_call.1} parent=5 // pred_check
        _
      $region26: #{tpu_custom_call.1} parent=5 // pred_check_branch
        %174 = sbr.rel (%p171) target = $region28
      $region27: #{tpu_custom_call.1} parent=5 // pred_region
        %s175 = ssub.s32 %s20, 1
        %s176 = sand.u32 %s33, 1
        %s177 = scalar_lea.sflag [#allocation3], %s176
        %s178 = sand.u32 %s33, 1
        %s179 = smul.addr %s178, 8
        %s180 = scalar_lea.vmem [#allocation2], %s179
        // Predicated region
        $region29: #{tpu_custom_call.1} parent=27 // pred_check
          %p181 = pneg %p46
        $region30: #{tpu_custom_call.1} parent=27 // pred_check_branch
          %183 = sbr.rel (%p181) target = $region32
        $region31: #{tpu_custom_call.1} parent=27 // pred_region
          %184 = dma.done %s177, 128
        $region32: #{tpu_custom_call.1} parent=27 // pred_fallthru
          _
        // Predicated region
        $region33: #{tpu_custom_call.1} parent=27 // pred_check
          %p185 = pneg %p67
        $region34: #{tpu_custom_call.1} parent=27 // pred_check_branch
          %187 = sbr.rel (%p185) target = $region36
        $region35: #{tpu_custom_call.1} parent=27 // pred_region
          %188 = dma.done [#allocation6], 1536
        $region36: #{tpu_custom_call.1} parent=27 // pred_fallthru
          _
        %s189 = sand.u32 %s33, 1
        %s190 = scalar_lea.sflag [#allocation3], %s189
        %s191 = sand.u32 %s33, 1
        %s192 = smul.addr %s191, 8
        %s193 = scalar_lea.vmem [#allocation2], %s192
        %p194 = pneg %p46
        %p195 = pneg %p43
        %p196 = pneg %p67
        %p197 = pneg %p64
        %p198 = pneg %p93
        %p199 = pneg %p90
        %s200 = sand.u32 %s80, 1
        %s201 = scalar_lea.sflag [#allocation4], %s200
        %s202 = sand.u32 %s80, 1
        %s203 = smul.addr %s202, 8
        %s204 = scalar_lea.vmem [#allocation7], %s203
        %p205 = pneg %p119
        %p206 = pneg %p116
        %s207 = sand.u32 %s106, 1
        %s208 = scalar_lea.sflag [#allocation9], %s207
        %s209 = sand.u32 %s106, 1
        %s210 = smul.addr %s209, 8
        %s211 = scalar_lea.vmem [#allocation8], %s210
        %v212 = vld [vmem:[#allocation5] sm:$0xff]
        %v213 = vld [vmem:[#allocation5 + $0x8] sm:$0xff]
        %v214 = vld [vmem:[#allocation5 + $0x10] sm:$0xff]
        %v215 = vld [vmem:[#allocation5 + $0x18] sm:$0xff]
        %v216 = vld [vmem:[#allocation5 + $0x20] sm:$0xff]
        %v217 = vld [vmem:[#allocation5 + $0x28] sm:$0xff]
        %v218 = vld [vmem:[#allocation5 + $0x30] sm:$0xff]
        %v219 = vld [vmem:[#allocation5 + $0x38] sm:$0xff]
        %v220 = vld [vmem:[#allocation5 + $0x40] sm:$0xff]
        %v221 = vld [vmem:[#allocation5 + $0x48] sm:$0xff]
        %v222 = vld [vmem:[#allocation5 + $0x50] sm:$0xff]
        %v223 = vld [vmem:[#allocation5 + $0x58] sm:$0xff]
        %v224 = vld [vmem:[%s180] sm:$0xff]
        %vm225 = vcmask 261120
        %v227 = vsel %vm225, %v224, 0
        %229 = vmatprep.subr.mxu0 %v213
        %230 = vmatpush1.msra.mxu0 %v212
        %231 = vmatprep.subr.mxu0 %v216
        %232 = vmatpush1.msra.mxu0 %v215
        %233 = vmatprep.subr.mxu0 %v219
        %234 = vmatpush1.msra.mxu0 %v218
        %235 = vmatprep.subr.mxu0 %v222
        %236 = vmatpush1.msra.mxu0 %v221
        %237 = vmatprep.subr.mxu0 0.0
        %238 = vmatpush1.msra.mxu0 0.0
        %239 = vmatprep.subr.mxu0 0.0
        %240 = vmatpush1.msra.mxu0 0.0
        %241 = vmatprep.subr.mxu0 0.0
        %242 = vmatpush1.msra.mxu0 0.0
        %243 = vmatprep.subr.mxu0 0.0
        %244 = vmatpush1.msra.mxu0 0.0
        %245 = vmatprep.subr.mxu0 0.0
        %246 = vmatpush1.msra.mxu0 0.0
        %247 = vmatprep.subr.mxu0 0.0
        %248 = vmatpush1.msra.mxu0 0.0
        %249 = vmatprep.subr.mxu0 0.0
        %250 = vmatpush1.msra.mxu0 0.0
        %251 = vmatprep.subr.mxu0 0.0
        %252 = vmatpush1.msra.mxu0 0.0
        %253 = vmatprep.subr.mxu0 0.0
        %254 = vmatpush1.msra.mxu0 0.0
        %255 = vmatprep.subr.mxu0 0.0
        %256 = vmatpush1.msra.mxu0 0.0
        %257 = vmatprep.subr.mxu0 0.0
        %258 = vmatpush1.msra.mxu0 0.0
        %259 = vmatprep.subr.mxu0 0.0
        %260 = vmatpush1.msra.mxu0 0.0
        %261 = vmatprep.subr.mxu0 0.0
        %262 = vmatpush1.msra.mxu0 0.0
        %263 = vmatprep.subr.mxu0 0.0
        %264 = vmatpush1.msra.mxu0 0.0
        %265 = vmatprep.subr.mxu0 0.0
        %266 = vmatpush1.msra.mxu0 0.0
        %267 = vmatprep.subr.mxu0 0.0
        %268 = vmatpush1.msra.mxu0 0.0
        %269 = vmatprep.subr.mxu0 0.0
        %270 = vmatpush1.msra.mxu0 0.0
        %271 = vmatprep.subr.mxu0 0.0
        %272 = vmatpush1.msra.mxu0 0.0
        %273 = vmatprep.subr.mxu0 0.0
        %274 = vmatpush1.msra.mxu0 0.0
        %275 = vmatprep.subr.mxu0 0.0
        %276 = vmatpush1.msra.mxu0 0.0
        %277 = vmatprep.subr.mxu0 0.0
        %278 = vmatpush1.msra.mxu0 0.0
        %279 = vmatprep.subr.mxu0 0.0
        %280 = vmatpush1.msra.mxu0 0.0
        %281 = vmatprep.subr.mxu0 0.0
        %282 = vmatpush1.msra.mxu0 0.0
        %283 = vmatprep.subr.mxu0 0.0
        %284 = vmatpush1.msra.mxu0 0.0
        %285 = vmatprep.subr.mxu0 0.0
        %286 = vmatpush1.msra.mxu0 0.0
        %287 = vmatprep.subr.mxu0 0.0
        %288 = vmatpush1.msra.mxu0 0.0
        %289 = vmatprep.subr.mxu0 0.0
        %290 = vmatpush1.msra.mxu0 0.0
        %291 = vmatprep.subr.mxu0 0.0
        %292 = vmatpush1.msra.mxu0 0.0
        %293 = vmatprep.mubr.f32.mxu0 0.0
        %294 = vmatmul.mubr.f32.gmra.mrb[0].mxu0 %v227
        %v295 = vpop.f32.mrb[0].mxu0
        %v296 = vadd.f32 0.0, %v295
        %v297 = vpop.f32.mrb[0].mxu0
        %v298 = vadd.f32 0.0, %v297
        %299 = vdwg.mxu0
        %300 = vmatprep.subr.mxu0 0.0
        %301 = vmatpush1.msra.mxu0 %v214
        %302 = vmatprep.subr.mxu0 0.0
        %303 = vmatpush1.msra.mxu0 %v217
        %304 = vmatprep.subr.mxu0 0.0
        %305 = vmatpush1.msra.mxu0 %v220
        %306 = vmatprep.subr.mxu0 0.0
        %307 = vmatpush1.msra.mxu0 %v223
        %308 = vmatprep.subr.mxu0 0.0
        %309 = vmatpush1.msra.mxu0 0.0
        %310 = vmatprep.subr.mxu0 0.0
        %311 = vmatpush1.msra.mxu0 0.0
        %312 = vmatprep.subr.mxu0 0.0
        %313 = vmatpush1.msra.mxu0 0.0
        %314 = vmatprep.subr.mxu0 0.0
        %315 = vmatpush1.msra.mxu0 0.0
        %316 = vmatprep.subr.mxu0 0.0
        %317 = vmatpush1.msra.mxu0 0.0
        %318 = vmatprep.subr.mxu0 0.0
        %319 = vmatpush1.msra.mxu0 0.0
        %320 = vmatprep.subr.mxu0 0.0
        %321 = vmatpush1.msra.mxu0 0.0
        %322 = vmatprep.subr.mxu0 0.0
        %323 = vmatpush1.msra.mxu0 0.0
        %324 = vmatprep.subr.mxu0 0.0
        %325 = vmatpush1.msra.mxu0 0.0
        %326 = vmatprep.subr.mxu0 0.0
        %327 = vmatpush1.msra.mxu0 0.0
        %328 = vmatprep.subr.mxu0 0.0
        %329 = vmatpush1.msra.mxu0 0.0
        %330 = vmatprep.subr.mxu0 0.0
        %331 = vmatpush1.msra.mxu0 0.0
        %332 = vmatprep.subr.mxu0 0.0
        %333 = vmatpush1.msra.mxu0 0.0
        %334 = vmatprep.subr.mxu0 0.0
        %335 = vmatpush1.msra.mxu0 0.0
        %336 = vmatprep.subr.mxu0 0.0
        %337 = vmatpush1.msra.mxu0 0.0
        %338 = vmatprep.subr.mxu0 0.0
        %339 = vmatpush1.msra.mxu0 0.0
        %340 = vmatprep.subr.mxu0 0.0
        %341 = vmatpush1.msra.mxu0 0.0
        %342 = vmatprep.subr.mxu0 0.0
        %343 = vmatpush1.msra.mxu0 0.0
        %344 = vmatprep.subr.mxu0 0.0
        %345 = vmatpush1.msra.mxu0 0.0
        %346 = vmatprep.subr.mxu0 0.0
        %347 = vmatpush1.msra.mxu0 0.0
        %348 = vmatprep.subr.mxu0 0.0
        %349 = vmatpush1.msra.mxu0 0.0
        %350 = vmatprep.subr.mxu0 0.0
        %351 = vmatpush1.msra.mxu0 0.0
        %352 = vmatprep.subr.mxu0 0.0
        %353 = vmatpush1.msra.mxu0 0.0
        %354 = vmatprep.subr.mxu0 0.0
        %355 = vmatpush1.msra.mxu0 0.0
        %356 = vmatprep.subr.mxu0 0.0
        %357 = vmatpush1.msra.mxu0 0.0
        %358 = vmatprep.subr.mxu0 0.0
        %359 = vmatpush1.msra.mxu0 0.0
        %360 = vmatprep.subr.mxu0 0.0
        %361 = vmatpush1.msra.mxu0 0.0
        %362 = vmatprep.subr.mxu0 0.0
        %363 = vmatpush1.msra.mxu0 0.0
        %364 = vmatprep.mubr.f32.mxu0 0.0
        %365 = vmatmul.mubr.f32.gmra.mrb[0].mxu0 %v227
        %v366 = vpop.f32.mrb[0].mxu0
        %v367 = vadd.f32 0.0, %v366
        %v368 = vpop.f32.mrb[0].mxu0
        %369 = vdwg.mxu0
        %v370 = vmul.f32 %v296, 0.25
        %371 = vmatprep.subr.mxu0 0.0
        %372 = vmatpush1.xpose.msra.mxu0 %v298
        %373 = vmatprep.subr.mxu0 0.0
        %374 = vmatpush1.xpose.msra.mxu0 0.0
        %375 = vmatprep.subr.mxu0 0.0
        %376 = vmatpush1.xpose.msra.mxu0 0.0
        %377 = vmatprep.subr.mxu0 0.0
        %378 = vmatpush1.xpose.msra.mxu0 0.0
        %379 = vmatprep.subr.mxu0 0.0
        %380 = vmatpush1.xpose.msra.mxu0 0.0
        %381 = vmatprep.subr.mxu0 0.0
        %382 = vmatpush1.xpose.msra.mxu0 0.0
        %383 = vmatprep.subr.mxu0 0.0
        %384 = vmatpush1.xpose.msra.mxu0 0.0
        %385 = vmatprep.subr.mxu0 0.0
        %386 = vmatpush1.xpose.msra.mxu0 0.0
        %387 = vmatprep.subr.mxu0 0.0
        %388 = vmatpush1.xpose.msra.mxu0 0.0
        %389 = vmatprep.subr.mxu0 0.0
        %390 = vmatpush1.xpose.msra.mxu0 0.0
        %391 = vmatprep.subr.mxu0 0.0
        %392 = vmatpush1.xpose.msra.mxu0 0.0
        %393 = vmatprep.subr.mxu0 0.0
        %394 = vmatpush1.xpose.msra.mxu0 0.0
        %395 = vmatprep.subr.mxu0 0.0
        %396 = vmatpush1.xpose.msra.mxu0 0.0
        %397 = vmatprep.subr.mxu0 0.0
        %398 = vmatpush1.xpose.msra.mxu0 0.0
        %399 = vmatprep.subr.mxu0 0.0
        %400 = vmatpush1.xpose.msra.mxu0 0.0
        %401 = vmatprep.subr.mxu0 0.0
        %402 = vmatpush1.xpose.msra.mxu0 0.0
        %403 = vmatprep.subr.mxu0 0.0
        %404 = vmatpush1.xpose.msra.mxu0 0.0
        %405 = vmatprep.subr.mxu0 0.0
        %406 = vmatpush1.xpose.msra.mxu0 0.0
        %407 = vmatprep.subr.mxu0 0.0
        %408 = vmatpush1.xpose.msra.mxu0 0.0
        %409 = vmatprep.subr.mxu0 0.0
        %410 = vmatpush1.xpose.msra.mxu0 0.0
        %411 = vmatprep.subr.mxu0 0.0
        %412 = vmatpush1.xpose.msra.mxu0 0.0
        %413 = vmatprep.subr.mxu0 0.0
        %414 = vmatpush1.xpose.msra.mxu0 0.0
        %415 = vmatprep.subr.mxu0 0.0
        %416 = vmatpush1.xpose.msra.mxu0 0.0
        %417 = vmatprep.subr.mxu0 0.0
        %418 = vmatpush1.xpose.msra.mxu0 0.0
        %419 = vmatprep.subr.mxu0 0.0
        %420 = vmatpush1.xpose.msra.mxu0 0.0
        %421 = vmatprep.subr.mxu0 0.0
        %422 = vmatpush1.xpose.msra.mxu0 0.0
        %423 = vmatprep.subr.mxu0 0.0
        %424 = vmatpush1.xpose.msra.mxu0 0.0
        %425 = vmatprep.subr.mxu0 0.0
        %426 = vmatpush1.xpose.msra.mxu0 0.0
        %427 = vmatprep.subr.mxu0 0.0
        %428 = vmatpush1.xpose.msra.mxu0 0.0
        %429 = vmatprep.subr.mxu0 0.0
        %430 = vmatpush1.xpose.msra.mxu0 0.0
        %431 = vmatprep.subr.mxu0 0.0
        %432 = vmatpush1.xpose.msra.mxu0 0.0
        %433 = vmatprep.subr.mxu0 0.0
        %434 = vmatpush1.xpose.msra.mxu0 0.0
        %435 = vmatprep.mubr.f32.mxu0 0.0
        %436 = vmatmul.mubr.f32.gmra.mrb[0].mxu0 %v370
        %v437 = vpop.f32.mrb[0].mxu0
        %v438 = vadd.f32 0.0, %v437
        %v439 = vpop.f32.mrb[0].mxu0
        %440 = vdwg.mxu0
        %vm441 = vcmask 64512
        %v442 = vsel %vm441, %v438, -inf
        %443 = vmax.xlane.f32.xlu0 %v442
        %v444 = vpop.xlane.xlu0 %443
        %v445 = vsub.f32 %v438, %v444
        %v446 = vmul.f32 %v445, 1.442695
        %v447 = vpow.pop %v446
        %v448 = vsel %vm441, %v447, 0.0
        %449 = vadd.xlane.f32.xlu0 %v448
        %v450 = vpop.xlane.xlu0 %449
        %v451 = vrcp.pop %v450
        %v452 = vmul.f32 %v447, %v451
        %v454 = vsel %vm441, %v452, 0
        %456 = vmatprep.subr.mxu0 0.0
        %457 = vmatpush1.msra.mxu0 %v367
        %458 = vmatprep.subr.mxu0 0.0
        %459 = vmatpush1.msra.mxu0 0.0
        %460 = vmatprep.subr.mxu0 0.0
        %461 = vmatpush1.msra.mxu0 0.0
        %462 = vmatprep.subr.mxu0 0.0
        %463 = vmatpush1.msra.mxu0 0.0
        %464 = vmatprep.subr.mxu0 0.0
        %465 = vmatpush1.msra.mxu0 0.0
        %466 = vmatprep.subr.mxu0 0.0
        %467 = vmatpush1.msra.mxu0 0.0
        %468 = vmatprep.subr.mxu0 0.0
        %469 = vmatpush1.msra.mxu0 0.0
        %470 = vmatprep.subr.mxu0 0.0
        %471 = vmatpush1.msra.mxu0 0.0
        %472 = vmatprep.subr.mxu0 0.0
        %473 = vmatpush1.msra.mxu0 0.0
        %474 = vmatprep.subr.mxu0 0.0
        %475 = vmatpush1.msra.mxu0 0.0
        %476 = vmatprep.subr.mxu0 0.0
        %477 = vmatpush1.msra.mxu0 0.0
        %478 = vmatprep.subr.mxu0 0.0
        %479 = vmatpush1.msra.mxu0 0.0
        %480 = vmatprep.subr.mxu0 0.0
        %481 = vmatpush1.msra.mxu0 0.0
        %482 = vmatprep.subr.mxu0 0.0
        %483 = vmatpush1.msra.mxu0 0.0
        %484 = vmatprep.subr.mxu0 0.0
        %485 = vmatpush1.msra.mxu0 0.0
        %486 = vmatprep.subr.mxu0 0.0
        %487 = vmatpush1.msra.mxu0 0.0
        %488 = vmatprep.subr.mxu0 0.0
        %489 = vmatpush1.msra.mxu0 0.0
        %490 = vmatprep.subr.mxu0 0.0
        %491 = vmatpush1.msra.mxu0 0.0
        %492 = vmatprep.subr.mxu0 0.0
        %493 = vmatpush1.msra.mxu0 0.0
        %494 = vmatprep.subr.mxu0 0.0
        %495 = vmatpush1.msra.mxu0 0.0
        %496 = vmatprep.subr.mxu0 0.0
        %497 = vmatpush1.msra.mxu0 0.0
        %498 = vmatprep.subr.mxu0 0.0
        %499 = vmatpush1.msra.mxu0 0.0
        %500 = vmatprep.subr.mxu0 0.0
        %501 = vmatpush1.msra.mxu0 0.0
        %502 = vmatprep.subr.mxu0 0.0
        %503 = vmatpush1.msra.mxu0 0.0
        %504 = vmatprep.subr.mxu0 0.0
        %505 = vmatpush1.msra.mxu0 0.0
        %506 = vmatprep.subr.mxu0 0.0
        %507 = vmatpush1.msra.mxu0 0.0
        %508 = vmatprep.subr.mxu0 0.0
        %509 = vmatpush1.msra.mxu0 0.0
        %510 = vmatprep.subr.mxu0 0.0
        %511 = vmatpush1.msra.mxu0 0.0
        %512 = vmatprep.subr.mxu0 0.0
        %513 = vmatpush1.msra.mxu0 0.0
        %514 = vmatprep.subr.mxu0 0.0
        %515 = vmatpush1.msra.mxu0 0.0
        %516 = vmatprep.subr.mxu0 0.0
        %517 = vmatpush1.msra.mxu0 0.0
        %518 = vmatprep.subr.mxu0 0.0
        %519 = vmatpush1.msra.mxu0 0.0
        %520 = vmatprep.mubr.f32.mxu0 0.0
        %521 = vmatmul.mubr.f32.gmra.mrb[0].mxu0 %v454
        %v522 = vpop.f32.mrb[0].mxu0
        %v523 = vadd.f32 0.0, %v522
        %v524 = vpop.f32.mrb[0].mxu0
        %525 = vdwg.mxu0
        %526 = vst [vmem:[%s204] sm:$0xff] %v523
        %527 = vst.msk [vmem:[%s211] sm:$0xff] %vm441, %v452
        %s528 = sand.u32 %s80, 1
        %s529 = scalar_lea.sflag [#allocation4], %s528
        %s530 = sand.u32 %s80, 1
        %s531 = smul.addr %s530, 8
        %s532 = scalar_lea.vmem [#allocation7], %s531
        %s533 = sand.u32 %s106, 1
        %s534 = scalar_lea.sflag [#allocation9], %s533
        %s535 = sand.u32 %s106, 1
        %s536 = smul.addr %s535, 8
        %s537 = scalar_lea.vmem [#allocation8], %s536
        // Predicated region
        $region37: #{tpu_custom_call.1} parent=27 // pred_check
          %p538 = pneg %p90
        $region38: #{tpu_custom_call.1} parent=27 // pred_check_branch
          %540 = sbr.rel (%p538) target = $region40
        $region39: #{tpu_custom_call.1} parent=27 // pred_region
          %s542 = ssub.s32 128, 128
          %543 = vsyncadd %s529, %s542
          %s544 = smul.addr %s25, 128
          %s545 = scalar_lea.hbm %s2, %s544
          %s547 = sshll.u32 %s532, 4
          %s548 = int_to_ptr.vmem [resolvable:$true] %s547
          %550 = dma.vmem_to_hbm [thread:$0]  %s548, 128, %s545, %s529
        $region40: #{tpu_custom_call.1} parent=27 // pred_fallthru
          _
        // Predicated region
        $region41: #{tpu_custom_call.1} parent=27 // pred_check
          %p551 = pneg %p116
        $region42: #{tpu_custom_call.1} parent=27 // pred_check_branch
          %553 = sbr.rel (%p551) target = $region44
        $region43: #{tpu_custom_call.1} parent=27 // pred_region
          %s555 = ssub.s32 128, 128
          %556 = vsyncadd %s534, %s555
          %s557 = smul.addr %s25, 128
          %s558 = scalar_lea.hbm %s3, %s557
          %s560 = sshll.u32 %s537, 4
          %s561 = int_to_ptr.vmem [resolvable:$true] %s560
          %563 = dma.vmem_to_hbm [thread:$0]  %s561, 128, %s558, %s534
        $region44: #{tpu_custom_call.1} parent=27 // pred_fallthru
          _
      $region28: #{tpu_custom_call.1} parent=5 // pred_fallthru
        _
      %p564 = scmp.le.s32.totalorder 2, %s20
      // Predicated region
      $region45: #{tpu_custom_call.1} parent=5 // pred_check
        %p565 = pneg %p564
      $region46: #{tpu_custom_call.1} parent=5 // pred_check_branch
        %567 = sbr.rel (%p565) target = $region48
      $region47: #{tpu_custom_call.1} parent=5 // pred_region
        %s568 = ssub.s32 %s20, 2
        // Predicated region
        $region49: #{tpu_custom_call.1} parent=47 // pred_check
          %p569 = pneg %p96
        $region50: #{tpu_custom_call.1} parent=47 // pred_check_branch
          %571 = sbr.rel (%p569) target = $region52
        $region51: #{tpu_custom_call.1} parent=47 // pred_region
          %s572 = sand.u32 %s81, 1
          %s573 = scalar_lea.sflag [#allocation4], %s572
          %s574 = sand.u32 %s81, 1
          %s575 = smul.addr %s574, 8
          %s576 = scalar_lea.vmem [#allocation7], %s575
          %577 = dma.done %s573, 128
        $region52: #{tpu_custom_call.1} parent=47 // pred_fallthru
          _
        // Predicated region
        $region53: #{tpu_custom_call.1} parent=47 // pred_check
          %p578 = pneg %p122
        $region54: #{tpu_custom_call.1} parent=47 // pred_check_branch
          %580 = sbr.rel (%p578) target = $region56
        $region55: #{tpu_custom_call.1} parent=47 // pred_region
          %s581 = sand.u32 %s107, 1
          %s582 = scalar_lea.sflag [#allocation9], %s581
          %s583 = sand.u32 %s107, 1
          %s584 = smul.addr %s583, 8
          %s585 = scalar_lea.vmem [#allocation8], %s584
          %586 = dma.done %s582, 128
        $region56: #{tpu_custom_call.1} parent=47 // pred_fallthru
          _
      $region48: #{tpu_custom_call.1} parent=5 // pred_fallthru
        _
    $region6: #{tpu_custom_call.1} parent=1 // loop_footer
      %s24 = sadd.s32 1, %s20
    $region7: #{tpu_custom_call.1} parent=1 // loop_footer_branch
      %19 = sbr.rel target = $region3
    $region8: #{tpu_custom_call.1} parent=1 // loop_exit
      _
    %587 = vsyncpa [#allocation3], 1
    %s588 = scalar_lea.sflag [#allocation3], 1
    %589 = vsyncpa %s588, 1
    %590 = vsyncpa [#allocation6], 1
    %591 = vsyncpa [#allocation4], 1
    %s592 = scalar_lea.sflag [#allocation4], 1
    %593 = vsyncpa %s592, 1
    %594 = vsyncpa [#allocation9], 1
    %s595 = scalar_lea.sflag [#allocation9], 1
    %596 = vsyncpa %s595, 1

</llo_original>
